<compile_context>
chip_gen: v6e
topology: v6e:2x2x1
jax: 0.10.0
libtpu: 0.0.40
codegen_flags: <defaults>
</compile_context>

<pallas_src>
import functools

import numpy as np

import jax
import jax.numpy as jnp
from jax import lax
from jax.experimental import pallas as pl
from jax.experimental.pallas import tpu as pltpu

EPS = 1e-5


# ----------------------------- kernel -----------------------------
def _channel_group_sum(v, group, width):
    """v: (R, width*group) f32 with lane index = w*group + c.  Returns the same shape
    where every lane holds sum_w v[:, w*group + c] of its channel.  Cyclic lane rolls on
    the XLU -> exact f32, and the result is already lane-broadcast.  Rolls act per-row,
    so multiple statistics stacked on the sublane axis share one roll chain."""
    acc = v
    if width & (width - 1) == 0:            # power of two: log2(width) doublings
        shift = group
        total = group * width
        while shift < total:
            acc = acc + pltpu.roll(acc, shift, axis=1)
            shift *= 2
    else:
        for j in range(1, width):
            acc = acc + pltpu.roll(v, j * group, axis=1)
    return acc


def residual_block_kernel(x_ref, rhs1_ref, rhs2_ref, pp_ref, o_ref, *, C, H, count):
    """Lane-dense layout: rows = N*H, lanes = W*C (lane = w*C + c).

    x_ref    : (N*H, W*Cin)        bf16 activations
    rhs1_ref : (W*Cin, 4*W*Cout)   bf16 banded weights [conv1 ky0 | ky1 | ky2 | 1x1 skip]
    rhs2_ref : (W*Cout, 3*W*Cout)  bf16 banded weights [conv2 ky0 | ky1 | ky2]
    pp_ref   : (5, W*Cout)         f32 rows = gamma1, beta1, gamma2, beta2, skip bias
    o_ref    : (N*H, W*Cout)       f32
    """
    f32 = jnp.float32
    rows, WC = o_ref.shape
    W = WC // C
    inv_count = 1.0 / count

    # Image-boundary row masks for the H-direction taps: they implement both the conv's
    # H zero padding and the cross-image / cyclic wrap of the row rolls below.
    h_idx = lax.broadcasted_iota(jnp.int32, (rows, 1), 0) % H
    top = (h_idx != 0).astype(f32)          # kill rows with h == 0     (ky = 0 tap)
    bot = (h_idx != H - 1).astype(f32)      # kill rows with h == H - 1 (ky = 2 tap)

    def taps(y_wide):
        # y_wide lanes = [ky0 | centre | ky2 | ...].  Combine the H-taps with XLU row
        # rolls ((S @ X) @ M == S @ (X @ M)) instead of (N*H, N*H) shift matmuls.
        up = pltpu.roll(y_wide[:, 0:WC], 1, axis=0)                   # row r <- row r-1
        dn = pltpu.roll(y_wide[:, 2 * WC:3 * WC], rows - 1, axis=0)   # row r <- row r+1
        return y_wide[:, WC:2 * WC] + top * up + bot * dn

    def bn_train(y, g_lane, b_lane):
        # Training-mode BatchNorm folded into one scale/shift: y*s + t with
        # s = gamma * rsqrt(var + eps), t = beta - s*mean (batch stats over N, H, W).
        # sum(y) and sum(y*y) stacked on the sublane axis -> ONE roll chain for both.
        stats = jnp.concatenate(
            [jnp.sum(y, axis=0, keepdims=True),
             jnp.sum(y * y, axis=0, keepdims=True)], axis=0)          # (2, W*C)
        stats = _channel_group_sum(stats, C, W) * inv_count
        mean_l = stats[0:1, :]
        var_l = stats[1:2, :] - mean_l * mean_l
        s = g_lane * lax.rsqrt(var_l + EPS)
        return y * s + (b_lane - s * mean_l)

    x = x_ref[...]

    # conv1 (3x3) + fused 1x1 skip: ONE wide bf16 MXU matmul with f32 accumulation; the
    # H-taps are recombined with rolls + masks, the skip slice picks up its bias.
    y1w = jnp.dot(x, rhs1_ref[...], preferred_element_type=f32)       # (rows, 4*WC)
    conv1 = taps(y1w)
    skip = y1w[:, 3 * WC:4 * WC] + pp_ref[4:5, :]

    # BN1 + ReLU.  (conv1's bias is exactly cancelled by the batch-mean subtraction.)
    y1 = jnp.maximum(bn_train(conv1, pp_ref[0:1, :], pp_ref[1:2, :]), 0.0)

    # conv2 (3x3): one wide matmul + rolls, then BN2 (conv bias again cancelled).
    y2w = jnp.dot(y1.astype(x.dtype), rhs2_ref[...], preferred_element_type=f32)
    y2 = bn_train(taps(y2w), pp_ref[2:3, :], pp_ref[3:4, :])

    # Residual add + final ReLU -> single unmasked lane-dense store.
    o_ref[...] = jnp.maximum(skip + y2, 0.0)


# ------------------- host-side ONE-TIME weight repacking -------------------
def _band_np(wk, ky, W):
    """wk: (Cout, Cin, 3, 3) OIHW.  Banded (W*Cin, W*Cout) matrix M for H-tap `ky`:
    M[wp*Cin+ci, w*Cout+co] = wk[co, ci, ky, wp-w+1] for |wp-w| <= 1 else 0, so a
    lane-dense input row @ M accumulates all W-direction taps (and the W zero padding)
    of that H-tap in one matmul."""
    Cout, Cin = wk.shape[0], wk.shape[1]
    m = np.zeros((W * Cin, W * Cout), np.float32)
    for kx in range(3):
        blk = wk[:, :, ky, kx].T.astype(np.float32)                   # (Cin, Cout)
        for w in range(W):
            wp = w + kx - 1
            if 0 <= wp < W:
                m[wp * Cin:(wp + 1) * Cin, w * Cout:(w + 1) * Cout] = blk
    return m


def _diag_np(w3, W):
    """1x1 conv as a block-diagonal (W*Cin, W*Cout) matrix (no bias)."""
    Cout, Cin = w3.shape[0], w3.shape[1]
    blk = w3[:, :, 0, 0].T.astype(np.float32)                         # (Cin, Cout)
    m = np.zeros((W * Cin, W * Cout), np.float32)
    for w in range(W):
        m[w * Cin:(w + 1) * Cin, w * Cout:(w + 1) * Cout] = blk
    return m


def pack_residual_block_params(params, W, dtype=jnp.bfloat16):
    """Run ONCE per parameter set (not per forward call).  Folds the 3x3 convs into
    banded matmul operands, stacks all taps of each conv (plus the 1x1 skip) into one
    wide RHS slab, and packs every per-channel parameter into one lane-dense array.
    conv1/conv2 biases are dropped: train-mode BN's mean subtraction cancels them.
    (If in_channels == out_channels the module's identity skip is just w3 = identity,
    b3 = 0 here.)"""
    (w1, _b1, g1, bt1, w2, _b2, g2, bt2, w3, b3) = params
    w1n = np.asarray(w1, np.float32)
    w2n = np.asarray(w2, np.float32)
    w3n = np.asarray(w3, np.float32)

    rhs1 = np.concatenate([_band_np(w1n, 0, W), _band_np(w1n, 1, W),
                           _band_np(w1n, 2, W), _diag_np(w3n, W)], axis=1)
    rhs2 = np.concatenate([_band_np(w2n, k, W) for k in range(3)], axis=1)

    def lane(v):  # per-channel vector -> (W*Cout,) so lane w*Cout + c holds v[c]
        return np.tile(np.asarray(v, np.float32), W)

    pp = np.stack([lane(g1), lane(bt1), lane(g2), lane(bt2), lane(b3)])  # (5, W*Cout)
    return (jnp.asarray(rhs1, dtype), jnp.asarray(rhs2, dtype),
            jnp.asarray(pp, jnp.float32))


# ----------------------------- wrapper -----------------------------
@jax.jit
def residual_block_pallas(x_nchw, packed):
    """x_nchw: (N, Cin, H, W) -> (N, Cout, H, W).  `packed` from pack_residual_block_params.
    To amortize per-call overhead, fold as many images as the VMEM budget allows into N."""
    rhs1, rhs2, pp = packed
    N, Cin, H, W = x_nchw.shape
    WC = pp.shape[1]
    Cout = WC // W
    rows = N * H

    # NHWC with (W, C) fused on the lane axis -> lane-dense rows; cast to matmul dtype.
    x2 = (jnp.transpose(x_nchw, (0, 2, 3, 1))
          .reshape(rows, W * Cin).astype(rhs1.dtype))

    vmem = pl.BlockSpec(memory_space=pltpu.MemorySpace.VMEM)
    out2 = pl.pallas_call(
        functools.partial(residual_block_kernel, C=Cout, H=H, count=N * H * W),
        out_shape=jax.ShapeDtypeStruct((rows, WC), jnp.float32),
        in_specs=[vmem] * 4,
        out_specs=vmem,
        compiler_params=pltpu.CompilerParams(vmem_limit_bytes=32 * 1024 * 1024),
    )(x2, rhs1, rhs2, pp)

    # TODO(synk): for large N*H (v7x: 64 MiB VMEM, 2 TCs) tile rows over a
    # dimension_semantics=("parallel",) grid with block rows a multiple of H (rolls then
    # never cross a block) and make the BN statistics a two-pass cross-tile reduction.
    return jnp.transpose(out2.reshape(N, H, W, Cout), (0, 3, 1, 2))


# ----------------------------- pure-JAX reference -----------------------------
def _conv_nchw(x, w, b, pad):
    y = lax.conv_general_dilated(x, w, window_strides=(1, 1),
                                 padding=((pad, pad), (pad, pad)),
                                 dimension_numbers=("NCHW", "OIHW", "NCHW"),
                                 precision=lax.Precision.HIGHEST)
    return y + b[None, :, None, None]


def _bn_train_nchw(y, gamma, beta):
    mean = jnp.mean(y, axis=(0, 2, 3), keepdims=True)
    var = jnp.mean((y - mean) ** 2, axis=(0, 2, 3), keepdims=True)
    return (gamma[None, :, None, None] * (y - mean) / jnp.sqrt(var + EPS)
            + beta[None, :, None, None])


def residual_block_ref(x, params, matmul_dtype=jnp.float32):
    """Pure-JAX reference.  With matmul_dtype=bf16 it mirrors the kernel's precision
    choices (bf16 conv inputs, f32 accumulation and BN) for a tight correctness check."""
    (w1, b1, g1, bt1, w2, b2, g2, bt2, w3, b3) = params
    cast = lambda t: t.astype(matmul_dtype).astype(jnp.float32)
    y = _conv_nchw(cast(x), cast(w1), b1, 1)
    y = jax.nn.relu(_bn_train_nchw(y, g1, bt1))
    y2 = _conv_nchw(cast(y), cast(w2), b2, 1)
    y2 = _bn_train_nchw(y2, g2, bt2)
    skip = _conv_nchw(cast(x), cast(w3), b3, 0)
    return jax.nn.relu(skip + y2)


if __name__ == "__main__":
    N, Cin, Cout, H, W = 2, 4, 8, 16, 16   # Cin != Cout -> 1x1 skip conv active

    key = jax.random.PRNGKey(0)
    ks = jax.random.split(key, 11)
    x = jax.random.normal(ks[0], (N, Cin, H, W), jnp.float32)

    # Deterministic synthetic parameters (PyTorch-equivalent shapes).
    w1 = 0.2 * jax.random.normal(ks[1], (Cout, Cin, 3, 3), jnp.float32)
    b1 = 0.1 * jax.random.normal(ks[2], (Cout,), jnp.float32)
    g1 = 1.0 + 0.1 * jax.random.normal(ks[3], (Cout,), jnp.float32)
    bt1 = 0.1 * jax.random.normal(ks[4], (Cout,), jnp.float32)
    w2 = 0.2 * jax.random.normal(ks[5], (Cout, Cout, 3, 3), jnp.float32)
    b2 = 0.1 * jax.random.normal(ks[6], (Cout,), jnp.float32)
    g2 = 1.0 + 0.1 * jax.random.normal(ks[7], (Cout,), jnp.float32)
    bt2 = 0.1 * jax.random.normal(ks[8], (Cout,), jnp.float32)
    w3 = 0.2 * jax.random.normal(ks[9], (Cout, Cin, 1, 1), jnp.float32)
    b3 = 0.1 * jax.random.normal(ks[10], (Cout,), jnp.float32)
    params = (w1, b1, g1, bt1, w2, b2, g2, bt2, w3, b3)

    packed = pack_residual_block_params(params, W, dtype=jnp.bfloat16)  # once per params
    out = jax.block_until_ready(residual_block_pallas(x, packed))
    assert out.shape == (N, Cout, H, W), out.shape

    # Tight check against a matched-precision reference (bf16 conv inputs, f32
    # accumulation + BN): validates the banded/rolled kernel math itself.
    ref_bf = jax.block_until_ready(residual_block_ref(x, params, jnp.bfloat16))
    err_bf = float(jnp.max(jnp.abs(out - ref_bf)))
    assert err_bf < 2e-2, f"max abs error vs matched-precision reference {err_bf}"

    # Loose sanity check against the full-f32 reference (difference = bf16 input
    # rounding only, f32 accumulation keeps it small).
    ref_f32 = jax.block_until_ready(residual_block_ref(x, params, jnp.float32))
    err_f32 = float(jnp.max(jnp.abs(out - ref_f32)))
    assert err_f32 < 2e-1, f"max abs error vs f32 reference {err_f32}"

    print("KERNEL_OK")
</pallas_src>

<mosaic_0001>
module attributes {stable_mosaic.version = 11 : i64} {
  func.func @residual_block_kernel(%arg0: memref<32x64xbf16, #tpu.memory_space<vmem>>, %arg1: memref<64x512xbf16, #tpu.memory_space<vmem>>, %arg2: memref<128x384xbf16, #tpu.memory_space<vmem>>, %arg3: memref<5x128xf32, #tpu.memory_space<vmem>>, %arg4: memref<32x128xf32, #tpu.memory_space<vmem>>) attributes {dimension_semantics = [], scalar_prefetch = 0 : i64, scratch_operands = 0 : i64, tpu.core_type = #tpu.core_type<tc>} {
    %0 = tpu.iota {dimensions = array<i32: 0>} : vector<32x1xi32>
    %c16_i32 = arith.constant 16 : i32
    %c0_i32 = arith.constant 0 : i32
    %1 = arith.cmpi eq, %c16_i32, %c0_i32 : i32
    %c1_i32 = arith.constant 1 : i32
    %2 = arith.select %1, %c1_i32, %c16_i32 : i32
    %3 = vector.broadcast %2 : i32 to vector<32x1xi32>
    %4 = arith.remsi %0, %3 : vector<32x1xi32>
    %c0_i32_0 = arith.constant 0 : i32
    %5 = vector.broadcast %c0_i32_0 : i32 to vector<32x1xi32>
    %6 = arith.cmpi ne, %4, %5 : vector<32x1xi32>
    %c0_i32_1 = arith.constant 0 : i32
    %7 = vector.broadcast %c0_i32_1 : i32 to vector<32x1xi32>
    %8 = arith.cmpi slt, %4, %7 : vector<32x1xi32>
    %c0_i32_2 = arith.constant 0 : i32
    %9 = arith.cmpi slt, %2, %c0_i32_2 : i32
    %10 = vector.broadcast %9 : i1 to vector<32x1xi1>
    %11 = vector.broadcast %10 : vector<32x1xi1> to vector<32x1xi1>
    %12 = arith.xori %8, %11 : vector<32x1xi1>
    %13 = arith.andi %12, %6 : vector<32x1xi1>
    %14 = vector.broadcast %2 : i32 to vector<32x1xi32>
    %15 = arith.addi %4, %14 : vector<32x1xi32>
    %16 = arith.select %13, %15, %4 : vector<32x1xi1>, vector<32x1xi32>
    %c0_i32_3 = arith.constant 0 : i32
    %17 = vector.broadcast %c0_i32_3 : i32 to vector<32x1xi32>
    %18 = arith.cmpi ne, %16, %17 : vector<32x1xi32>
    %19 = arith.extui %18 : vector<32x1xi1> to vector<32x1xi32>
    %20 = arith.sitofp %19 : vector<32x1xi32> to vector<32x1xf32>
    %c15_i32 = arith.constant 15 : i32
    %21 = vector.broadcast %c15_i32 : i32 to vector<32x1xi32>
    %22 = arith.cmpi ne, %16, %21 : vector<32x1xi32>
    %23 = arith.extui %22 : vector<32x1xi1> to vector<32x1xi32>
    %24 = arith.sitofp %23 : vector<32x1xi32> to vector<32x1xf32>
    %c0 = arith.constant 0 : index
    %c0_4 = arith.constant 0 : index
    %25 = vector.load %arg0[%c0, %c0_4] : memref<32x64xbf16, #tpu.memory_space<vmem>>, vector<32x64xbf16>
    %c0_5 = arith.constant 0 : index
    %c0_6 = arith.constant 0 : index
    %26 = vector.load %arg1[%c0_5, %c0_6] : memref<64x512xbf16, #tpu.memory_space<vmem>>, vector<64x512xbf16>
    %cst = arith.constant dense<0.000000e+00> : vector<32x512xf32>
    %27 = tpu.matmul %25, %26, %cst {dimension_numbers = #tpu.dot_dimension_numbers<[1], [0], [0], [1], [0, 0, 1, 1], [], []>} : vector<32x64xbf16>, vector<64x512xbf16>, vector<32x512xf32> -> vector<32x512xf32>
    %28 = vector.extract_strided_slice %27 {offsets = [0, 0], sizes = [32, 128], strides = [1, 1]} : vector<32x512xf32> to vector<32x128xf32>
    %c1_i32_7 = arith.constant 1 : i32
    %29 = tpu.dynamic_rotate %28 by %c1_i32_7 dim 0 : vector<32x128xf32>, i32 -> vector<32x128xf32>
    %30 = vector.extract_strided_slice %27 {offsets = [0, 256], sizes = [32, 128], strides = [1, 1]} : vector<32x512xf32> to vector<32x128xf32>
    %c31_i32 = arith.constant 31 : i32
    %31 = tpu.dynamic_rotate %30 by %c31_i32 dim 0 : vector<32x128xf32>, i32 -> vector<32x128xf32>
    %32 = vector.extract_strided_slice %27 {offsets = [0, 128], sizes = [32, 128], strides = [1, 1]} : vector<32x512xf32> to vector<32x128xf32>
    %33 = vector.broadcast %20 : vector<32x1xf32> to vector<32x128xf32>
    %34 = arith.mulf %33, %29 : vector<32x128xf32>
    %35 = arith.addf %32, %34 : vector<32x128xf32>
    %36 = vector.broadcast %24 : vector<32x1xf32> to vector<32x128xf32>
    %37 = arith.mulf %36, %31 : vector<32x128xf32>
    %38 = arith.addf %35, %37 : vector<32x128xf32>
    %39 = vector.extract_strided_slice %27 {offsets = [0, 384], sizes = [32, 128], strides = [1, 1]} : vector<32x512xf32> to vector<32x128xf32>
    %c4 = arith.constant 4 : index
    %c0_8 = arith.constant 0 : index
    %40 = vector.load %arg3[%c4, %c0_8] : memref<5x128xf32, #tpu.memory_space<vmem>>, vector<1x128xf32>
    %41 = vector.broadcast %40 : vector<1x128xf32> to vector<32x128xf32>
    %42 = arith.addf %39, %41 : vector<32x128xf32>
    %c0_9 = arith.constant 0 : index
    %c0_10 = arith.constant 0 : index
    %43 = vector.load %arg3[%c0_9, %c0_10] : memref<5x128xf32, #tpu.memory_space<vmem>>, vector<1x128xf32>
    %c1 = arith.constant 1 : index
    %c0_11 = arith.constant 0 : index
    %44 = vector.load %arg3[%c1, %c0_11] : memref<5x128xf32, #tpu.memory_space<vmem>>, vector<1x128xf32>
    %cst_12 = arith.constant dense<0.000000e+00> : vector<128xf32>
    %45 = vector.multi_reduction <add>, %38, %cst_12 [0] : vector<32x128xf32> to vector<128xf32>
    %46 = vector.shape_cast %45 : vector<128xf32> to vector<1x128xf32>
    %47 = arith.mulf %38, %38 : vector<32x128xf32>
    %cst_13 = arith.constant dense<0.000000e+00> : vector<128xf32>
    %48 = vector.multi_reduction <add>, %47, %cst_13 [0] : vector<32x128xf32> to vector<128xf32>
    %49 = vector.shape_cast %48 : vector<128xf32> to vector<1x128xf32>
    %50 = tpu.concatenate %46, %49 in 0 : vector<1x128xf32>, vector<1x128xf32> -> vector<2x128xf32>
    %c8_i32 = arith.constant 8 : i32
    %51 = tpu.dynamic_rotate %50 by %c8_i32 dim 1 : vector<2x128xf32>, i32 -> vector<2x128xf32>
    %52 = arith.addf %50, %51 : vector<2x128xf32>
    %c16_i32_14 = arith.constant 16 : i32
    %53 = tpu.dynamic_rotate %52 by %c16_i32_14 dim 1 : vector<2x128xf32>, i32 -> vector<2x128xf32>
    %54 = arith.addf %52, %53 : vector<2x128xf32>
    %c32_i32 = arith.constant 32 : i32
    %55 = tpu.dynamic_rotate %54 by %c32_i32 dim 1 : vector<2x128xf32>, i32 -> vector<2x128xf32>
    %56 = arith.addf %54, %55 : vector<2x128xf32>
    %c64_i32 = arith.constant 64 : i32
    %57 = tpu.dynamic_rotate %56 by %c64_i32 dim 1 : vector<2x128xf32>, i32 -> vector<2x128xf32>
    %58 = arith.addf %56, %57 : vector<2x128xf32>
    %cst_15 = arith.constant 0.001953125 : f32
    %59 = vector.broadcast %cst_15 : f32 to vector<2x128xf32>
    %60 = arith.mulf %58, %59 : vector<2x128xf32>
    %61 = vector.extract_strided_slice %60 {offsets = [0, 0], sizes = [1, 128], strides = [1, 1]} : vector<2x128xf32> to vector<1x128xf32>
    %62 = vector.extract_strided_slice %60 {offsets = [1, 0], sizes = [1, 128], strides = [1, 1]} : vector<2x128xf32> to vector<1x128xf32>
    %63 = arith.mulf %61, %61 : vector<1x128xf32>
    %64 = arith.subf %62, %63 : vector<1x128xf32>
    %cst_16 = arith.constant 9.99999974E-6 : f32
    %65 = vector.broadcast %cst_16 : f32 to vector<1x128xf32>
    %66 = arith.addf %64, %65 : vector<1x128xf32>
    %67 = math.rsqrt %66 : vector<1x128xf32>
    %68 = arith.mulf %43, %67 : vector<1x128xf32>
    %69 = vector.broadcast %68 : vector<1x128xf32> to vector<32x128xf32>
    %70 = arith.mulf %38, %69 : vector<32x128xf32>
    %71 = arith.mulf %68, %61 : vector<1x128xf32>
    %72 = arith.subf %44, %71 : vector<1x128xf32>
    %73 = vector.broadcast %72 : vector<1x128xf32> to vector<32x128xf32>
    %74 = arith.addf %70, %73 : vector<32x128xf32>
    %cst_17 = arith.constant 0.000000e+00 : f32
    %75 = vector.broadcast %cst_17 : f32 to vector<32x128xf32>
    %76 = arith.maximumf %74, %75 : vector<32x128xf32>
    %77 = arith.truncf %76 : vector<32x128xf32> to vector<32x128xbf16>
    %c0_18 = arith.constant 0 : index
    %c0_19 = arith.constant 0 : index
    %78 = vector.load %arg2[%c0_18, %c0_19] : memref<128x384xbf16, #tpu.memory_space<vmem>>, vector<128x384xbf16>
    %cst_20 = arith.constant dense<0.000000e+00> : vector<32x384xf32>
    %79 = tpu.matmul %77, %78, %cst_20 {dimension_numbers = #tpu.dot_dimension_numbers<[1], [0], [0], [1], [0, 0, 1, 1], [], []>} : vector<32x128xbf16>, vector<128x384xbf16>, vector<32x384xf32> -> vector<32x384xf32>
    %80 = vector.extract_strided_slice %79 {offsets = [0, 0], sizes = [32, 128], strides = [1, 1]} : vector<32x384xf32> to vector<32x128xf32>
    %c1_i32_21 = arith.constant 1 : i32
    %81 = tpu.dynamic_rotate %80 by %c1_i32_21 dim 0 : vector<32x128xf32>, i32 -> vector<32x128xf32>
    %82 = vector.extract_strided_slice %79 {offsets = [0, 256], sizes = [32, 128], strides = [1, 1]} : vector<32x384xf32> to vector<32x128xf32>
    %c31_i32_22 = arith.constant 31 : i32
    %83 = tpu.dynamic_rotate %82 by %c31_i32_22 dim 0 : vector<32x128xf32>, i32 -> vector<32x128xf32>
    %84 = vector.extract_strided_slice %79 {offsets = [0, 128], sizes = [32, 128], strides = [1, 1]} : vector<32x384xf32> to vector<32x128xf32>
    %85 = vector.broadcast %20 : vector<32x1xf32> to vector<32x128xf32>
    %86 = arith.mulf %85, %81 : vector<32x128xf32>
    %87 = arith.addf %84, %86 : vector<32x128xf32>
    %88 = vector.broadcast %24 : vector<32x1xf32> to vector<32x128xf32>
    %89 = arith.mulf %88, %83 : vector<32x128xf32>
    %90 = arith.addf %87, %89 : vector<32x128xf32>
    %c2 = arith.constant 2 : index
    %c0_23 = arith.constant 0 : index
    %91 = vector.load %arg3[%c2, %c0_23] : memref<5x128xf32, #tpu.memory_space<vmem>>, vector<1x128xf32>
    %c3 = arith.constant 3 : index
    %c0_24 = arith.constant 0 : index
    %92 = vector.load %arg3[%c3, %c0_24] : memref<5x128xf32, #tpu.memory_space<vmem>>, vector<1x128xf32>
    %cst_25 = arith.constant dense<0.000000e+00> : vector<128xf32>
    %93 = vector.multi_reduction <add>, %90, %cst_25 [0] : vector<32x128xf32> to vector<128xf32>
    %94 = vector.shape_cast %93 : vector<128xf32> to vector<1x128xf32>
    %95 = arith.mulf %90, %90 : vector<32x128xf32>
    %cst_26 = arith.constant dense<0.000000e+00> : vector<128xf32>
    %96 = vector.multi_reduction <add>, %95, %cst_26 [0] : vector<32x128xf32> to vector<128xf32>
    %97 = vector.shape_cast %96 : vector<128xf32> to vector<1x128xf32>
    %98 = tpu.concatenate %94, %97 in 0 : vector<1x128xf32>, vector<1x128xf32> -> vector<2x128xf32>
    %c8_i32_27 = arith.constant 8 : i32
    %99 = tpu.dynamic_rotate %98 by %c8_i32_27 dim 1 : vector<2x128xf32>, i32 -> vector<2x128xf32>
    %100 = arith.addf %98, %99 : vector<2x128xf32>
    %c16_i32_28 = arith.constant 16 : i32
    %101 = tpu.dynamic_rotate %100 by %c16_i32_28 dim 1 : vector<2x128xf32>, i32 -> vector<2x128xf32>
    %102 = arith.addf %100, %101 : vector<2x128xf32>
    %c32_i32_29 = arith.constant 32 : i32
    %103 = tpu.dynamic_rotate %102 by %c32_i32_29 dim 1 : vector<2x128xf32>, i32 -> vector<2x128xf32>
    %104 = arith.addf %102, %103 : vector<2x128xf32>
    %c64_i32_30 = arith.constant 64 : i32
    %105 = tpu.dynamic_rotate %104 by %c64_i32_30 dim 1 : vector<2x128xf32>, i32 -> vector<2x128xf32>
    %106 = arith.addf %104, %105 : vector<2x128xf32>
    %cst_31 = arith.constant 0.001953125 : f32
    %107 = vector.broadcast %cst_31 : f32 to vector<2x128xf32>
    %108 = arith.mulf %106, %107 : vector<2x128xf32>
    %109 = vector.extract_strided_slice %108 {offsets = [0, 0], sizes = [1, 128], strides = [1, 1]} : vector<2x128xf32> to vector<1x128xf32>
    %110 = vector.extract_strided_slice %108 {offsets = [1, 0], sizes = [1, 128], strides = [1, 1]} : vector<2x128xf32> to vector<1x128xf32>
    %111 = arith.mulf %109, %109 : vector<1x128xf32>
    %112 = arith.subf %110, %111 : vector<1x128xf32>
    %cst_32 = arith.constant 9.99999974E-6 : f32
    %113 = vector.broadcast %cst_32 : f32 to vector<1x128xf32>
    %114 = arith.addf %112, %113 : vector<1x128xf32>
    %115 = math.rsqrt %114 : vector<1x128xf32>
    %116 = arith.mulf %91, %115 : vector<1x128xf32>
    %117 = vector.broadcast %116 : vector<1x128xf32> to vector<32x128xf32>
    %118 = arith.mulf %90, %117 : vector<32x128xf32>
    %119 = arith.mulf %116, %109 : vector<1x128xf32>
    %120 = arith.subf %92, %119 : vector<1x128xf32>
    %121 = vector.broadcast %120 : vector<1x128xf32> to vector<32x128xf32>
    %122 = arith.addf %118, %121 : vector<32x128xf32>
    %123 = arith.addf %42, %122 : vector<32x128xf32>
    %cst_33 = arith.constant 0.000000e+00 : f32
    %124 = vector.broadcast %cst_33 : f32 to vector<32x128xf32>
    %125 = arith.maximumf %123, %124 : vector<32x128xf32>
    %c0_34 = arith.constant 0 : index
    %c0_35 = arith.constant 0 : index
    %126 = vector.load %arg4[%c0_34, %c0_35] : memref<32x128xf32, #tpu.memory_space<vmem>>, vector<32x128xf32>
    tpu.vector_store %arg4[%c0_34, %c0_35], %125 {strides = array<i32>} : memref<32x128xf32, #tpu.memory_space<vmem>>, vector<32x128xf32>,
    return
  }
}

</mosaic_0001>

<llo_original>
// kernel: residual_block_pallas.1
$region0: #{residual_block_pallas.1}
  #allocation0 [shape = 'u32[]', space=smem, size = 0x4, offset = 0x4, fixed_abs, tag = 'smem constant byte address 0x4 - core index']
  #allocation1 [shape = 'u32[144,128]{1,0:T(1,128)}', space=vmem, size = 0x12000, scoped, tag = 'internal scratch']
  %s0 = inlined_call_operand.vmem [shape: bf16[32,64], index: 0, kind: input, shape index: {}]
  %s1 = inlined_call_operand.vmem [shape: bf16[64,512], index: 1, kind: input, shape index: {}]
  %s2 = inlined_call_operand.vmem [shape: bf16[128,384], index: 2, kind: input, shape index: {}]
  %s3 = inlined_call_operand.vmem [shape: f32[5,128], index: 3, kind: input, shape index: {}]
  %s4 = inlined_call_operand.vmem [shape: f32[32,128], index: 4, kind: output, shape index: {}]
  %s5 = sld [smem:[#allocation0]]
  $region26: #{residual_block_pallas.1} parent=0
    _
  %s7 = ssub.s32 1, %s5
  %s8 = scalar_select 0, %s7, %s5
  // Predicated region
  $region2: #{residual_block_pallas.1} parent=0 // pred_check
    _
  $region3: #{residual_block_pallas.1} parent=0 // pred_check_branch
    %10 = sbr.rel (0) target = $region5
  $region4: #{residual_block_pallas.1} parent=0 // pred_region
    _
  $region5: #{residual_block_pallas.1} parent=0 // pred_fallthru
    _
  // Predicated region
  $region6: #{residual_block_pallas.1} parent=0 // pred_check
    _
  $region7: #{residual_block_pallas.1} parent=0 // pred_check_branch
    %12 = sbr.rel (0) target = $region9
  $region8: #{residual_block_pallas.1} parent=0 // pred_region
    _
  $region9: #{residual_block_pallas.1} parent=0 // pred_fallthru
    _
  // Predicated region
  $region10: #{residual_block_pallas.1} parent=0 // pred_check
    _
  $region11: #{residual_block_pallas.1} parent=0 // pred_check_branch
    %14 = sbr.rel (0) target = $region13
  $region12: #{residual_block_pallas.1} parent=0 // pred_region
    _
  $region13: #{residual_block_pallas.1} parent=0 // pred_fallthru
    _
  // Predicated region
  $region14: #{residual_block_pallas.1} parent=0 // pred_check
    _
  $region15: #{residual_block_pallas.1} parent=0 // pred_check_branch
    %16 = sbr.rel (0) target = $region17
  $region16: #{residual_block_pallas.1} parent=0 // pred_region
    _
  $region17: #{residual_block_pallas.1} parent=0 // pred_fallthru
    _
  %v18 = vlaneseq
  %v19 = vshrl.u32 %v18, 7
  %v20 = vadd.s32 %v19, 8
  %v21 = vadd.s32 %v19, 16
  %v22 = vadd.s32 %v19, 24
  %vm23 = vcmp.lt.s32.totalorder %v19, 0
  %v24 = vsub.s32 0, %v19
  %v25 = vsel %vm23, %v24, %v19
  %v26 = vshrl.u32 %v25, 4
  %v27 = vand.u32 %v25, 15
  %v28 = vsub.s32 0, %v27
  %v29 = vsel %vm23, %v28, %v27
  %vm30 = vcmp.lt.s32.totalorder %v20, 0
  %v31 = vsub.s32 0, %v20
  %v32 = vsel %vm30, %v31, %v20
  %v33 = vshrl.u32 %v32, 4
  %v34 = vand.u32 %v32, 15
  %v35 = vsub.s32 0, %v34
  %v36 = vsel %vm30, %v35, %v34
  %vm37 = vcmp.lt.s32.totalorder %v21, 0
  %v38 = vsub.s32 0, %v21
  %v39 = vsel %vm37, %v38, %v21
  %v40 = vshrl.u32 %v39, 4
  %v41 = vand.u32 %v39, 15
  %v42 = vsub.s32 0, %v41
  %v43 = vsel %vm37, %v42, %v41
  %vm44 = vcmp.lt.s32.totalorder %v22, 0
  %v45 = vsub.s32 0, %v22
  %v46 = vsel %vm44, %v45, %v22
  %v47 = vshrl.u32 %v46, 4
  %v48 = vand.u32 %v46, 15
  %v49 = vsub.s32 0, %v48
  %v50 = vsel %vm44, %v49, %v48
  %vm51 = vcmp.ne.s32.totalorder %v29, 0
  %vm52 = vcmp.ne.s32.totalorder %v36, 0
  %vm53 = vcmp.ne.s32.totalorder %v43, 0
  %vm54 = vcmp.ne.s32.totalorder %v50, 0
  %vm55 = vcmp.lt.s32.totalorder %v29, 0
  %vm56 = vcmp.lt.s32.totalorder %v36, 0
  %vm57 = vcmp.lt.s32.totalorder %v43, 0
  %vm58 = vcmp.lt.s32.totalorder %v50, 0
  %vm59 = vmand %vm55, %vm51
  %vm60 = vmand %vm56, %vm52
  %vm61 = vmand %vm57, %vm53
  %vm62 = vmand %vm58, %vm54
  %v63 = vadd.s32 %v29, 16
  %v64 = vadd.s32 %v36, 16
  %v65 = vadd.s32 %v43, 16
  %v66 = vadd.s32 %v50, 16
  %v67 = vsel %vm59, %v63, %v29
  %v68 = vsel %vm60, %v64, %v36
  %v69 = vsel %vm61, %v65, %v43
  %v70 = vsel %vm62, %v66, %v50
  %vm71 = vcmp.ne.s32.totalorder %v67, 0
  %vm72 = vcmp.ne.s32.totalorder %v68, 0
  %vm73 = vcmp.ne.s32.totalorder %v69, 0
  %vm74 = vcmp.ne.s32.totalorder %v70, 0
  %v75 = vsel %vm71, 1, 0
  %v76 = vsel %vm72, 1, 0
  %v77 = vsel %vm73, 1, 0
  %v78 = vsel %vm74, 1, 0
  %v79 = vcvt.s32.f32 %v75
  %v80 = vcvt.s32.f32 %v76
  %v81 = vcvt.s32.f32 %v77
  %v82 = vcvt.s32.f32 %v78
  %vm83 = vcmp.ne.s32.totalorder %v67, 15
  %vm84 = vcmp.ne.s32.totalorder %v68, 15
  %vm85 = vcmp.ne.s32.totalorder %v69, 15
  %vm86 = vcmp.ne.s32.totalorder %v70, 15
  %v87 = vsel %vm83, 1, 0
  %v88 = vsel %vm84, 1, 0
  %v89 = vsel %vm85, 1, 0
  %v90 = vsel %vm86, 1, 0
  %v91 = vcvt.s32.f32 %v87
  %v92 = vcvt.s32.f32 %v88
  %v93 = vcvt.s32.f32 %v89
  %v94 = vcvt.s32.f32 %v90
  %v95 = vld [vmem:[%s0] sm:$0xf]
  %v96 = vld [vmem:[%s0 + $0x4] sm:$0xf]
  %v97 = vld [vmem:[%s0 + $0x8] sm:$0xf]
  %v98 = vld [vmem:[%s0 + $0xc] sm:$0xf]
  %v99 = vld [vmem:[%s1] sm:$0xff]
  %v100 = vld [vmem:[%s1 + $0x8] sm:$0xff]
  %v101 = vld [vmem:[%s1 + $0x10] sm:$0xff]
  %v102 = vld [vmem:[%s1 + $0x18] sm:$0xff]
  %v103 = vld [vmem:[%s1 + $0x20] sm:$0xff]
  %v104 = vld [vmem:[%s1 + $0x28] sm:$0xff]
  %v105 = vld [vmem:[%s1 + $0x30] sm:$0xff]
  %v106 = vld [vmem:[%s1 + $0x38] sm:$0xff]
  %v107 = vld [vmem:[%s1 + $0x40] sm:$0xff]
  %v108 = vld [vmem:[%s1 + $0x48] sm:$0xff]
  %v109 = vld [vmem:[%s1 + $0x50] sm:$0xff]
  %v110 = vld [vmem:[%s1 + $0x58] sm:$0xff]
  %v111 = vld [vmem:[%s1 + $0x60] sm:$0xff]
  %v112 = vld [vmem:[%s1 + $0x68] sm:$0xff]
  %v113 = vld [vmem:[%s1 + $0x70] sm:$0xff]
  %v114 = vld [vmem:[%s1 + $0x78] sm:$0xff]
  %v119 = vunpack.c.l.b16 %v95
  %v120 = vunpack.c.l.b16 %v96
  %v121 = vunpack.c.l.b16 %v97
  %v122 = vunpack.c.l.b16 %v98
  %v123 = vpack.c.b16 %v120, %v119
  %v124 = vpack.c.b16 %v122, %v121
  %v141 = vunpack.c.l.b16 %v99
  %v142 = vunpack.c.h.b16 %v99
  %v143 = vunpack.c.l.b16 %v100
  %v144 = vunpack.c.h.b16 %v100
  %v145 = vunpack.c.l.b16 %v101
  %v146 = vunpack.c.h.b16 %v101
  %v147 = vunpack.c.l.b16 %v102
  %v148 = vunpack.c.h.b16 %v102
  %v149 = vunpack.c.l.b16 %v103
  %v150 = vunpack.c.h.b16 %v103
  %v151 = vunpack.c.l.b16 %v104
  %v152 = vunpack.c.h.b16 %v104
  %v153 = vunpack.c.l.b16 %v105
  %v154 = vunpack.c.h.b16 %v105
  %v155 = vunpack.c.l.b16 %v106
  %v156 = vunpack.c.h.b16 %v106
  %v157 = vunpack.c.l.b16 %v107
  %v158 = vunpack.c.h.b16 %v107
  %v159 = vunpack.c.l.b16 %v108
  %v160 = vunpack.c.h.b16 %v108
  %v161 = vunpack.c.l.b16 %v109
  %v162 = vunpack.c.h.b16 %v109
  %v163 = vunpack.c.l.b16 %v110
  %v164 = vunpack.c.h.b16 %v110
  %v165 = vunpack.c.l.b16 %v111
  %v166 = vunpack.c.h.b16 %v111
  %v167 = vunpack.c.l.b16 %v112
  %v168 = vunpack.c.h.b16 %v112
  %v169 = vunpack.c.l.b16 %v113
  %v170 = vunpack.c.h.b16 %v113
  %v171 = vunpack.c.l.b16 %v114
  %v172 = vunpack.c.h.b16 %v114
  %v173 = vpack.c.b16 %v145, %v141
  %v174 = vpack.c.b16 %v146, %v142
  %v175 = vpack.c.b16 %v147, %v143
  %v176 = vpack.c.b16 %v148, %v144
  %v177 = vpack.c.b16 %v153, %v149
  %v178 = vpack.c.b16 %v154, %v150
  %v179 = vpack.c.b16 %v155, %v151
  %v180 = vpack.c.b16 %v156, %v152
  %v181 = vpack.c.b16 %v161, %v157
  %v182 = vpack.c.b16 %v162, %v158
  %v183 = vpack.c.b16 %v163, %v159
  %v184 = vpack.c.b16 %v164, %v160
  %v185 = vpack.c.b16 %v169, %v165
  %v186 = vpack.c.b16 %v170, %v166
  %v187 = vpack.c.b16 %v171, %v167
  %v188 = vpack.c.b16 %v172, %v168
  %vm205 = vcmask 523264
  %v207 = vsel %vm205, %v123, 0
  %v210 = vsel %vm205, %v124, 0
  %212 = vmatprep.subr.bf16.mxu0 0
  %213 = vmatpush1.bf16.msra.mxu0 0
  %214 = vmatprep.subr.bf16.mxu0 0
  %215 = vmatpush1.bf16.msra.mxu0 0
  %216 = vmatprep.subr.bf16.mxu0 0
  %217 = vmatpush1.bf16.msra.mxu0 0
  %218 = vmatprep.subr.bf16.mxu0 0
  %219 = vmatpush1.bf16.msra.mxu0 0
  %220 = vmatprep.subr.bf16.mxu0 %v186
  %221 = vmatpush1.bf16.msra.mxu0 %v185
  %222 = vmatprep.subr.bf16.mxu0 %v182
  %223 = vmatpush1.bf16.msra.mxu0 %v181
  %224 = vmatprep.subr.bf16.mxu0 %v178
  %225 = vmatpush1.bf16.msra.mxu0 %v177
  %226 = vmatprep.subr.bf16.mxu0 %v174
  %227 = vmatpush1.bf16.msra.mxu0 %v173
  %228 = vmatprep.subr.bf16.mxu0 0
  %229 = vmatpush2.bf16.msra.mxu0 0
  %230 = vmatprep.subr.bf16.mxu0 0
  %231 = vmatpush2.bf16.msra.mxu0 0
  %232 = vmatprep.subr.bf16.mxu0 0
  %233 = vmatpush2.bf16.msra.mxu0 0
  %234 = vmatprep.subr.bf16.mxu0 0
  %235 = vmatpush2.bf16.msra.mxu0 0
  %236 = vmatprep.subr.bf16.mxu0 0
  %237 = vmatpush2.bf16.msra.mxu0 0
  %238 = vmatprep.subr.bf16.mxu0 0
  %239 = vmatpush2.bf16.msra.mxu0 0
  %240 = vmatprep.subr.bf16.mxu0 0
  %241 = vmatpush2.bf16.msra.mxu0 0
  %242 = vmatprep.subr.bf16.mxu0 0
  %243 = vmatpush2.bf16.msra.mxu0 0
  %244 = vmatprep.mubr.bf16.mxu0 0
  %245 = vmatmul.mubr.bf16.gmra.mxu0 %v207
  %v246 = vpop.f32.mrf.mxu0
  %v247 = vadd.f32 0.0, %v246
  %v248 = vpop.f32.mrf.mxu0
  %v249 = vadd.f32 0.0, %v248
  %v250 = vpop.f32.mrf.mxu0
  %v251 = vadd.f32 0.0, %v250
  %v252 = vpop.f32.mrf.mxu0
  %v253 = vadd.f32 0.0, %v252
  %254 = vmatprep.mubr.bf16.mxu0 0
  %255 = vmatmul.mubr.bf16.gmra.mxu0 %v210
  %v256 = vpop.f32.mrf.mxu0
  %v257 = vadd.f32 0.0, %v256
  %v258 = vpop.f32.mrf.mxu0
  %v259 = vadd.f32 0.0, %v258
  %v260 = vpop.f32.mrf.mxu0
  %v261 = vadd.f32 0.0, %v260
  %v262 = vpop.f32.mrf.mxu0
  %v263 = vadd.f32 0.0, %v262
  %264 = vdwg.mxu0
  %265 = vmatprep.subr.bf16.mxu0 0
  %266 = vmatpush1.bf16.msra.mxu0 0
  %267 = vmatprep.subr.bf16.mxu0 0
  %268 = vmatpush1.bf16.msra.mxu0 0
  %269 = vmatprep.subr.bf16.mxu0 0
  %270 = vmatpush1.bf16.msra.mxu0 0
  %271 = vmatprep.subr.bf16.mxu0 0
  %272 = vmatpush1.bf16.msra.mxu0 0
  %273 = vmatprep.subr.bf16.mxu0 %v188
  %274 = vmatpush1.bf16.msra.mxu0 %v187
  %275 = vmatprep.subr.bf16.mxu0 %v184
  %276 = vmatpush1.bf16.msra.mxu0 %v183
  %277 = vmatprep.subr.bf16.mxu0 %v180
  %278 = vmatpush1.bf16.msra.mxu0 %v179
  %279 = vmatprep.subr.bf16.mxu0 %v176
  %280 = vmatpush1.bf16.msra.mxu0 %v175
  %281 = vmatprep.subr.bf16.mxu0 0
  %282 = vmatpush2.bf16.msra.mxu0 0
  %283 = vmatprep.subr.bf16.mxu0 0
  %284 = vmatpush2.bf16.msra.mxu0 0
  %285 = vmatprep.subr.bf16.mxu0 0
  %286 = vmatpush2.bf16.msra.mxu0 0
  %287 = vmatprep.subr.bf16.mxu0 0
  %288 = vmatpush2.bf16.msra.mxu0 0
  %289 = vmatprep.subr.bf16.mxu0 0
  %290 = vmatpush2.bf16.msra.mxu0 0
  %291 = vmatprep.subr.bf16.mxu0 0
  %292 = vmatpush2.bf16.msra.mxu0 0
  %293 = vmatprep.subr.bf16.mxu0 0
  %294 = vmatpush2.bf16.msra.mxu0 0
  %295 = vmatprep.subr.bf16.mxu0 0
  %296 = vmatpush2.bf16.msra.mxu0 0
  %297 = vmatprep.mubr.bf16.mxu0 0
  %298 = vmatmul.mubr.bf16.gmra.mxu0 %v207
  %v299 = vpop.f32.mrf.mxu0
  %v300 = vadd.f32 0.0, %v299
  %v301 = vpop.f32.mrf.mxu0
  %v302 = vadd.f32 0.0, %v301
  %v303 = vpop.f32.mrf.mxu0
  %v304 = vadd.f32 0.0, %v303
  %v305 = vpop.f32.mrf.mxu0
  %v306 = vadd.f32 0.0, %v305
  %307 = vmatprep.mubr.bf16.mxu0 0
  %308 = vmatmul.mubr.bf16.gmra.mxu0 %v210
  %v309 = vpop.f32.mrf.mxu0
  %v310 = vadd.f32 0.0, %v309
  %v311 = vpop.f32.mrf.mxu0
  %v312 = vadd.f32 0.0, %v311
  %v313 = vpop.f32.mrf.mxu0
  %v314 = vadd.f32 0.0, %v313
  %v315 = vpop.f32.mrf.mxu0
  %v316 = vadd.f32 0.0, %v315
  %317 = vdwg.mxu0
  %v318 = vrot.slane %v247, 7
  %v319 = vrot.slane %v251, 7
  %v320 = vrot.slane %v257, 7
  %v321 = vrot.slane %v261, 7
  %vm322 = vcmp.lt.s32.totalorder %v19, 1
  %v323 = vsel %vm322, %v320, %v321
  %v324 = vsel %vm322, %v319, %v320
  %v325 = vsel %vm322, %v318, %v319
  %v326 = vsel %vm322, %v321, %v318
  %v327 = vrot.slane %v300, 1
  %v328 = vrot.slane %v304, 1
  %v329 = vrot.slane %v310, 1
  %v330 = vrot.slane %v314, 1
  %vm331 = vcmp.lt.s32.totalorder %v19, 7
  %v332 = vsel %vm331, %v329, %v330
  %v333 = vsel %vm331, %v328, %v329
  %v334 = vsel %vm331, %v327, %v328
  %v335 = vsel %vm331, %v330, %v327
  %v336 = vmul.f32 %v79, %v326
  %v337 = vmul.f32 %v80, %v325
  %v338 = vmul.f32 %v81, %v324
  %v339 = vmul.f32 %v82, %v323
  %v340 = vadd.f32 %v249, %v336
  %v341 = vadd.f32 %v253, %v337
  %v342 = vadd.f32 %v259, %v338
  %v343 = vadd.f32 %v263, %v339
  %v344 = vmul.f32 %v91, %v334
  %v345 = vmul.f32 %v92, %v333
  %v346 = vmul.f32 %v93, %v332
  %v347 = vmul.f32 %v94, %v335
  %v348 = vadd.f32 %v340, %v344
  %v349 = vadd.f32 %v341, %v345
  %v350 = vadd.f32 %v342, %v346
  %v351 = vadd.f32 %v343, %v347
  %v352 = vld [vmem:[%s3 + $0x4] sm:$0x1]
  %v353 = vlaneseq
  %v354 = vshrl.u32 %v353, 7
  %v355 = vsub.s32 0, %v354
  %v356 = vrot.slane %v352, %v355
  %v357 = vadd.f32 %v302, %v356
  %v358 = vadd.f32 %v306, %v356
  %v359 = vadd.f32 %v312, %v356
  %v360 = vadd.f32 %v316, %v356
  %v361 = vld [vmem:[%s3] sm:$0x1]
  %v362 = vld [vmem:[%s3 + $0x1] sm:$0x1]
  %v363 = vadd.f32 %v348, %v349
  %v364 = vadd.f32 %v363, %v350
  %v365 = vadd.f32 %v364, %v351
  %v366 = vrot.slane %v365, 4
  %v367 = vadd.f32 %v365, %v366
  %v368 = vrot.slane %v367, 2
  %v369 = vadd.f32 %v367, %v368
  %v370 = vrot.slane %v369, 1
  %v371 = vadd.f32 %v369, %v370
  %v372 = vmul.f32 %v348, %v348
  %v373 = vmul.f32 %v349, %v349
  %v374 = vmul.f32 %v350, %v350
  %v375 = vmul.f32 %v351, %v351
  %v376 = vadd.f32 %v372, %v373
  %v377 = vadd.f32 %v376, %v374
  %v378 = vadd.f32 %v377, %v375
  %v379 = vrot.slane %v378, 4
  %v380 = vadd.f32 %v378, %v379
  %v381 = vrot.slane %v380, 2
  %v382 = vadd.f32 %v380, %v381
  %v383 = vrot.slane %v382, 1
  %v384 = vadd.f32 %v382, %v383
  %vm385 = vcmask 1040384
  %v386 = vsel %vm385, %v371, %v384
  %387 = vrot.lane.b32.xlu0 %v386, 8
  %v388 = vpop.permute.xlu0 %387
  %v389 = vadd.f32 %v386, %v388
  %390 = vrot.lane.b32.xlu0 %v389, 16
  %v391 = vpop.permute.xlu0 %390
  %v392 = vadd.f32 %v389, %v391
  %393 = vrot.lane.b32.xlu0 %v392, 32
  %v394 = vpop.permute.xlu0 %393
  %v395 = vadd.f32 %v392, %v394
  %396 = vrot.lane.b32.xlu0 %v395, 64
  %v397 = vpop.permute.xlu0 %396
  %v398 = vadd.f32 %v395, %v397
  %v399 = vmul.f32 %v398, 0.001953125
  %v400 = vmul.f32 %v399, %v399
  %v402 = vrot.slane %v400, 7
  %v404 = vsub.f32 %v399, %v402
  %v405 = vadd.f32 %v404, 1e-05
  %v406 = vrsqrt.pop %v405
  %v408 = vrot.slane %v406, 1
  %v410 = vmul.f32 %v361, %v408
  %v411 = vlaneseq
  %v412 = vshrl.u32 %v411, 7
  %v413 = vsub.s32 0, %v412
  %v414 = vrot.slane %v410, %v413
  %v415 = vmul.f32 %v348, %v414
  %v416 = vmul.f32 %v349, %v414
  %v417 = vmul.f32 %v350, %v414
  %v418 = vmul.f32 %v351, %v414
  %v419 = vmul.f32 %v410, %v399
  %v420 = vsub.f32 %v362, %v419
  %v421 = vlaneseq
  %v422 = vshrl.u32 %v421, 7
  %v423 = vsub.s32 0, %v422
  %v424 = vrot.slane %v420, %v423
  %v425 = vadd.f32 %v415, %v424
  %v426 = vadd.f32 %v416, %v424
  %v427 = vadd.f32 %v417, %v424
  %v428 = vadd.f32 %v418, %v424
  %v429 = vmax.f32 %v425, 0.0
  %v430 = vmax.f32 %v426, 0.0
  %v431 = vmax.f32 %v427, 0.0
  %v432 = vmax.f32 %v428, 0.0
  %v433 = vpack.c.bf16 %v430, %v429
  %v434 = vpack.c.bf16 %v432, %v431
  %v435 = vld [vmem:[%s2] sm:$0xff]
  %v436 = vld [vmem:[%s2 + $0x8] sm:$0xf]
  %v437 = vld [vmem:[%s2 + $0xc] sm:$0xff]
  %v438 = vld [vmem:[%s2 + $0x14] sm:$0xf]
  %v439 = vld [vmem:[%s2 + $0x18] sm:$0xff]
  %v440 = vld [vmem:[%s2 + $0x20] sm:$0xf]
  %v441 = vld [vmem:[%s2 + $0x24] sm:$0xff]
  %v442 = vld [vmem:[%s2 + $0x2c] sm:$0xf]
  %v443 = vld [vmem:[%s2 + $0x30] sm:$0xff]
  %v444 = vld [vmem:[%s2 + $0x38] sm:$0xf]
  %v445 = vld [vmem:[%s2 + $0x3c] sm:$0xff]
  %v446 = vld [vmem:[%s2 + $0x44] sm:$0xf]
  %v447 = vld [vmem:[%s2 + $0x48] sm:$0xff]
  %v448 = vld [vmem:[%s2 + $0x50] sm:$0xf]
  %v449 = vld [vmem:[%s2 + $0x54] sm:$0xff]
  %v450 = vld [vmem:[%s2 + $0x5c] sm:$0xf]
  %v451 = vld [vmem:[%s2 + $0x60] sm:$0xff]
  %v452 = vld [vmem:[%s2 + $0x68] sm:$0xf]
  %v453 = vld [vmem:[%s2 + $0x6c] sm:$0xff]
  %v454 = vld [vmem:[%s2 + $0x74] sm:$0xf]
  %v455 = vld [vmem:[%s2 + $0x78] sm:$0xff]
  %v456 = vld [vmem:[%s2 + $0x80] sm:$0xf]
  %v457 = vld [vmem:[%s2 + $0x84] sm:$0xff]
  %v458 = vld [vmem:[%s2 + $0x8c] sm:$0xf]
  %v459 = vld [vmem:[%s2 + $0x90] sm:$0xff]
  %v460 = vld [vmem:[%s2 + $0x98] sm:$0xf]
  %v461 = vld [vmem:[%s2 + $0x9c] sm:$0xff]
  %v462 = vld [vmem:[%s2 + $0xa4] sm:$0xf]
  %v463 = vld [vmem:[%s2 + $0xa8] sm:$0xff]
  %v464 = vld [vmem:[%s2 + $0xb0] sm:$0xf]
  %v465 = vld [vmem:[%s2 + $0xb4] sm:$0xff]
  %v466 = vld [vmem:[%s2 + $0xbc] sm:$0xf]
  %v499 = vunpack.c.l.b16 %v435
  %v500 = vunpack.c.h.b16 %v435
  %v501 = vunpack.c.l.b16 %v436
  %v502 = vunpack.c.l.b16 %v437
  %v503 = vunpack.c.h.b16 %v437
  %v504 = vunpack.c.l.b16 %v438
  %v505 = vunpack.c.l.b16 %v439
  %v506 = vunpack.c.h.b16 %v439
  %v507 = vunpack.c.l.b16 %v440
  %v508 = vunpack.c.l.b16 %v441
  %v509 = vunpack.c.h.b16 %v441
  %v510 = vunpack.c.l.b16 %v442
  %v511 = vunpack.c.l.b16 %v443
  %v512 = vunpack.c.h.b16 %v443
  %v513 = vunpack.c.l.b16 %v444
  %v514 = vunpack.c.l.b16 %v445
  %v515 = vunpack.c.h.b16 %v445
  %v516 = vunpack.c.l.b16 %v446
  %v517 = vunpack.c.l.b16 %v447
  %v518 = vunpack.c.h.b16 %v447
  %v519 = vunpack.c.l.b16 %v448
  %v520 = vunpack.c.l.b16 %v449
  %v521 = vunpack.c.h.b16 %v449
  %v522 = vunpack.c.l.b16 %v450
  %v523 = vunpack.c.l.b16 %v451
  %v524 = vunpack.c.h.b16 %v451
  %v525 = vunpack.c.l.b16 %v452
  %v526 = vunpack.c.l.b16 %v453
  %v527 = vunpack.c.h.b16 %v453
  %v528 = vunpack.c.l.b16 %v454
  %v529 = vunpack.c.l.b16 %v455
  %v530 = vunpack.c.h.b16 %v455
  %v531 = vunpack.c.l.b16 %v456
  %v532 = vunpack.c.l.b16 %v457
  %v533 = vunpack.c.h.b16 %v457
  %v534 = vunpack.c.l.b16 %v458
  %v535 = vunpack.c.l.b16 %v459
  %v536 = vunpack.c.h.b16 %v459
  %v537 = vunpack.c.l.b16 %v460
  %v538 = vunpack.c.l.b16 %v461
  %v539 = vunpack.c.h.b16 %v461
  %v540 = vunpack.c.l.b16 %v462
  %v541 = vunpack.c.l.b16 %v463
  %v542 = vunpack.c.h.b16 %v463
  %v543 = vunpack.c.l.b16 %v464
  %v544 = vunpack.c.l.b16 %v465
  %v545 = vunpack.c.h.b16 %v465
  %v546 = vunpack.c.l.b16 %v466
  %v547 = vpack.c.b16 %v502, %v499
  %v548 = vpack.c.b16 %v503, %v500
  %v549 = vpack.c.b16 %v504, %v501
  %v550 = vpack.c.b16 %v508, %v505
  %v551 = vpack.c.b16 %v509, %v506
  %v552 = vpack.c.b16 %v510, %v507
  %v553 = vpack.c.b16 %v514, %v511
  %v554 = vpack.c.b16 %v515, %v512
  %v555 = vpack.c.b16 %v516, %v513
  %v556 = vpack.c.b16 %v520, %v517
  %v557 = vpack.c.b16 %v521, %v518
  %v558 = vpack.c.b16 %v522, %v519
  %v559 = vpack.c.b16 %v526, %v523
  %v560 = vpack.c.b16 %v527, %v524
  %v561 = vpack.c.b16 %v528, %v525
  %v562 = vpack.c.b16 %v532, %v529
  %v563 = vpack.c.b16 %v533, %v530
  %v564 = vpack.c.b16 %v534, %v531
  %v565 = vpack.c.b16 %v538, %v535
  %v566 = vpack.c.b16 %v539, %v536
  %v567 = vpack.c.b16 %v540, %v537
  %v568 = vpack.c.b16 %v544, %v541
  %v569 = vpack.c.b16 %v545, %v542
  %v570 = vpack.c.b16 %v546, %v543
  %595 = vmatprep.subr.bf16.mxu0 %v569
  %596 = vmatpush1.bf16.msra.mxu0 %v568
  %597 = vmatprep.subr.bf16.mxu0 %v566
  %598 = vmatpush1.bf16.msra.mxu0 %v565
  %599 = vmatprep.subr.bf16.mxu0 %v563
  %600 = vmatpush1.bf16.msra.mxu0 %v562
  %601 = vmatprep.subr.bf16.mxu0 %v560
  %602 = vmatpush1.bf16.msra.mxu0 %v559
  %603 = vmatprep.subr.bf16.mxu0 %v557
  %604 = vmatpush1.bf16.msra.mxu0 %v556
  %605 = vmatprep.subr.bf16.mxu0 %v554
  %606 = vmatpush1.bf16.msra.mxu0 %v553
  %607 = vmatprep.subr.bf16.mxu0 %v551
  %608 = vmatpush1.bf16.msra.mxu0 %v550
  %609 = vmatprep.subr.bf16.mxu0 %v548
  %610 = vmatpush1.bf16.msra.mxu0 %v547
  %611 = vmatprep.subr.bf16.mxu0 0
  %612 = vmatpush2.bf16.msra.mxu0 0
  %613 = vmatprep.subr.bf16.mxu0 0
  %614 = vmatpush2.bf16.msra.mxu0 0
  %615 = vmatprep.subr.bf16.mxu0 0
  %616 = vmatpush2.bf16.msra.mxu0 0
  %617 = vmatprep.subr.bf16.mxu0 0
  %618 = vmatpush2.bf16.msra.mxu0 0
  %619 = vmatprep.subr.bf16.mxu0 0
  %620 = vmatpush2.bf16.msra.mxu0 0
  %621 = vmatprep.subr.bf16.mxu0 0
  %622 = vmatpush2.bf16.msra.mxu0 0
  %623 = vmatprep.subr.bf16.mxu0 0
  %624 = vmatpush2.bf16.msra.mxu0 0
  %625 = vmatprep.subr.bf16.mxu0 0
  %626 = vmatpush2.bf16.msra.mxu0 0
  %627 = vmatprep.mubr.bf16.mxu0 0
  %628 = vmatmul.mubr.bf16.gmra.mxu0 %v433
  %v629 = vpop.f32.mrf.mxu0
  %v630 = vadd.f32 0.0, %v629
  %v631 = vpop.f32.mrf.mxu0
  %v632 = vadd.f32 0.0, %v631
  %v633 = vpop.f32.mrf.mxu0
  %v634 = vadd.f32 0.0, %v633
  %v635 = vpop.f32.mrf.mxu0
  %v636 = vadd.f32 0.0, %v635
  %637 = vmatprep.mubr.bf16.mxu0 0
  %638 = vmatmul.mubr.bf16.gmra.mxu0 %v434
  %v639 = vpop.f32.mrf.mxu0
  %v640 = vadd.f32 0.0, %v639
  %v641 = vpop.f32.mrf.mxu0
  %v642 = vadd.f32 0.0, %v641
  %v643 = vpop.f32.mrf.mxu0
  %v644 = vadd.f32 0.0, %v643
  %v645 = vpop.f32.mrf.mxu0
  %v646 = vadd.f32 0.0, %v645
  %647 = vdwg.mxu0
  %648 = vmatprep.subr.bf16.mxu0 0
  %649 = vmatpush1.bf16.msra.mxu0 %v570
  %650 = vmatprep.subr.bf16.mxu0 0
  %651 = vmatpush1.bf16.msra.mxu0 %v567
  %652 = vmatprep.subr.bf16.mxu0 0
  %653 = vmatpush1.bf16.msra.mxu0 %v564
  %654 = vmatprep.subr.bf16.mxu0 0
  %655 = vmatpush1.bf16.msra.mxu0 %v561
  %656 = vmatprep.subr.bf16.mxu0 0
  %657 = vmatpush1.bf16.msra.mxu0 %v558
  %658 = vmatprep.subr.bf16.mxu0 0
  %659 = vmatpush1.bf16.msra.mxu0 %v555
  %660 = vmatprep.subr.bf16.mxu0 0
  %661 = vmatpush1.bf16.msra.mxu0 %v552
  %662 = vmatprep.subr.bf16.mxu0 0
  %663 = vmatpush1.bf16.msra.mxu0 %v549
  %664 = vmatprep.subr.bf16.mxu0 0
  %665 = vmatpush2.bf16.msra.mxu0 0
  %666 = vmatprep.subr.bf16.mxu0 0
  %667 = vmatpush2.bf16.msra.mxu0 0
  %668 = vmatprep.subr.bf16.mxu0 0
  %669 = vmatpush2.bf16.msra.mxu0 0
  %670 = vmatprep.subr.bf16.mxu0 0
  %671 = vmatpush2.bf16.msra.mxu0 0
  %672 = vmatprep.subr.bf16.mxu0 0
  %673 = vmatpush2.bf16.msra.mxu0 0
  %674 = vmatprep.subr.bf16.mxu0 0
  %675 = vmatpush2.bf16.msra.mxu0 0
  %676 = vmatprep.subr.bf16.mxu0 0
  %677 = vmatpush2.bf16.msra.mxu0 0
  %678 = vmatprep.subr.bf16.mxu0 0
  %679 = vmatpush2.bf16.msra.mxu0 0
  %680 = vmatprep.mubr.bf16.mxu0 0
  %681 = vmatmul.mubr.bf16.gmra.mxu0 %v433
  %v682 = vpop.f32.mrf.mxu0
  %v683 = vadd.f32 0.0, %v682
  %v684 = vpop.f32.mrf.mxu0
  %v685 = vpop.f32.mrf.mxu0
  %v686 = vadd.f32 0.0, %v685
  %v687 = vpop.f32.mrf.mxu0
  %688 = vmatprep.mubr.bf16.mxu0 0
  %689 = vmatmul.mubr.bf16.gmra.mxu0 %v434
  %v690 = vpop.f32.mrf.mxu0
  %v691 = vadd.f32 0.0, %v690
  %v692 = vpop.f32.mrf.mxu0
  %v693 = vpop.f32.mrf.mxu0
  %v694 = vadd.f32 0.0, %v693
  %v695 = vpop.f32.mrf.mxu0
  %696 = vdwg.mxu0
  %v697 = vrot.slane %v630, 7
  %v698 = vrot.slane %v634, 7
  %v699 = vrot.slane %v640, 7
  %v700 = vrot.slane %v644, 7
  %v701 = vsel %vm322, %v699, %v700
  %v702 = vsel %vm322, %v698, %v699
  %v703 = vsel %vm322, %v697, %v698
  %v704 = vsel %vm322, %v700, %v697
  %v705 = vrot.slane %v683, 1
  %v706 = vrot.slane %v686, 1
  %v707 = vrot.slane %v691, 1
  %v708 = vrot.slane %v694, 1
  %v709 = vsel %vm331, %v707, %v708
  %v710 = vsel %vm331, %v706, %v707
  %v711 = vsel %vm331, %v705, %v706
  %v712 = vsel %vm331, %v708, %v705
  %v713 = vmul.f32 %v79, %v704
  %v714 = vmul.f32 %v80, %v703
  %v715 = vmul.f32 %v81, %v702
  %v716 = vmul.f32 %v82, %v701
  %v717 = vadd.f32 %v632, %v713
  %v718 = vadd.f32 %v636, %v714
  %v719 = vadd.f32 %v642, %v715
  %v720 = vadd.f32 %v646, %v716
  %v721 = vmul.f32 %v91, %v711
  %v722 = vmul.f32 %v92, %v710
  %v723 = vmul.f32 %v93, %v709
  %v724 = vmul.f32 %v94, %v712
  %v725 = vadd.f32 %v717, %v721
  %v726 = vadd.f32 %v718, %v722
  %v727 = vadd.f32 %v719, %v723
  %v728 = vadd.f32 %v720, %v724
  %v729 = vld [vmem:[%s3 + $0x2] sm:$0x1]
  %v730 = vld [vmem:[%s3 + $0x3] sm:$0x1]
  %v731 = vadd.f32 %v725, %v726
  %v732 = vadd.f32 %v731, %v727
  %v733 = vadd.f32 %v732, %v728
  %v734 = vrot.slane %v733, 4
  %v735 = vadd.f32 %v733, %v734
  %v736 = vrot.slane %v735, 2
  %v737 = vadd.f32 %v735, %v736
  %v738 = vrot.slane %v737, 1
  %v739 = vadd.f32 %v737, %v738
  %v740 = vmul.f32 %v725, %v725
  %v741 = vmul.f32 %v726, %v726
  %v742 = vmul.f32 %v727, %v727
  %v743 = vmul.f32 %v728, %v728
  %v744 = vadd.f32 %v740, %v741
  %v745 = vadd.f32 %v744, %v742
  %v746 = vadd.f32 %v745, %v743
  %v747 = vrot.slane %v746, 4
  %v748 = vadd.f32 %v746, %v747
  %v749 = vrot.slane %v748, 2
  %v750 = vadd.f32 %v748, %v749
  %v751 = vrot.slane %v750, 1
  %v752 = vadd.f32 %v750, %v751
  %v753 = vsel %vm385, %v739, %v752
  %754 = vrot.lane.b32.xlu0 %v753, 8
  %v755 = vpop.permute.xlu0 %754
  %v756 = vadd.f32 %v753, %v755
  %757 = vrot.lane.b32.xlu0 %v756, 16
  %v758 = vpop.permute.xlu0 %757
  %v759 = vadd.f32 %v756, %v758
  %760 = vrot.lane.b32.xlu0 %v759, 32
  %v761 = vpop.permute.xlu0 %760
  %v762 = vadd.f32 %v759, %v761
  %763 = vrot.lane.b32.xlu0 %v762, 64
  %v764 = vpop.permute.xlu0 %763
  %v765 = vadd.f32 %v762, %v764
  %v766 = vmul.f32 %v765, 0.001953125
  %v767 = vmul.f32 %v766, %v766
  %v769 = vrot.slane %v767, 7
  %v771 = vsub.f32 %v766, %v769
  %v772 = vadd.f32 %v771, 1e-05
  %v773 = vrsqrt.pop %v772
  %v775 = vrot.slane %v773, 1
  %v777 = vmul.f32 %v729, %v775
  %v778 = vlaneseq
  %v779 = vshrl.u32 %v778, 7
  %v780 = vsub.s32 0, %v779
  %v781 = vrot.slane %v777, %v780
  %v782 = vmul.f32 %v725, %v781
  %v783 = vmul.f32 %v726, %v781
  %v784 = vmul.f32 %v727, %v781
  %v785 = vmul.f32 %v728, %v781
  %v786 = vmul.f32 %v777, %v766
  %v787 = vsub.f32 %v730, %v786
  %v788 = vlaneseq
  %v789 = vshrl.u32 %v788, 7
  %v790 = vsub.s32 0, %v789
  %v791 = vrot.slane %v787, %v790
  %v792 = vadd.f32 %v782, %v791
  %v793 = vadd.f32 %v783, %v791
  %v794 = vadd.f32 %v784, %v791
  %v795 = vadd.f32 %v785, %v791
  %v796 = vadd.f32 %v357, %v792
  %v797 = vadd.f32 %v358, %v793
  %v798 = vadd.f32 %v359, %v794
  %v799 = vadd.f32 %v360, %v795
  %v800 = vmax.f32 %v796, 0.0
  %v801 = vmax.f32 %v797, 0.0
  %v802 = vmax.f32 %v798, 0.0
  %v803 = vmax.f32 %v799, 0.0
  %804 = vst [vmem:[%s4] sm:$0xff] %v800
  %805 = vst [vmem:[%s4 + $0x8] sm:$0xff] %v801
  %806 = vst [vmem:[%s4 + $0x10] sm:$0xff] %v802
  %807 = vst [vmem:[%s4 + $0x18] sm:$0xff] %v803
  // Predicated region
  $region18: #{residual_block_pallas.1} parent=0 // pred_check
    _
  $region19: #{residual_block_pallas.1} parent=0 // pred_check_branch
    %809 = sbr.rel (0) target = $region21
  $region20: #{residual_block_pallas.1} parent=0 // pred_region
    _
  $region21: #{residual_block_pallas.1} parent=0 // pred_fallthru
    _
  // Predicated region
  $region22: #{residual_block_pallas.1} parent=0 // pred_check
    _
  $region23: #{residual_block_pallas.1} parent=0 // pred_check_branch
    %811 = sbr.rel (0) target = $region25
  $region24: #{residual_block_pallas.1} parent=0 // pred_region
    _
  $region25: #{residual_block_pallas.1} parent=0 // pred_fallthru
    _

</llo_original>
